<compile_context>
chip_gen: v7x
topology: tpu7x:2x2x1
jax: 0.10.0
libtpu: 0.0.40
codegen_flags: <defaults>
</compile_context>

<pallas_src>
from functools import partial

import jax
import jax.numpy as jnp
import numpy as np
from jax.experimental import pallas as pl
from jax.experimental.pallas import tpu as pltpu

_CP = 128   # channel lanes (conv1 outputs / conv2 inputs), zero-padded
_OP = 128   # conv2 output lanes, zero-padded (real logits live in [:10])


def _fullyconv_kernel(xp_ref, w1_ref, w2_ref, out_ref, *,
                      TB, L1, L2, K, KP, stride, pad):
    # xp_ref : (TB, L + 2*pad)   circularly padded input (in_channels == 1)
    # w1_ref : (KP, 128)         w1[k, c]   (taps padded K->KP, chans C->128)
    # w2_ref : (K*128, 128)      w2[k*128+c, j]  fused (tap, channel) rows
    # out_ref: (TB, 128) f32     lane-dense; real logits in columns [:10]
    w1 = w1_ref[...]
    w2 = w2_ref[...]
    cdt = w1.dtype                                             # MXU dtype
    xp = xp_ref[...].astype(jnp.float32)                       # (TB, Lp)

    # ---- conv1 as ONE MXU matmul ----------------------------------------
    # im2col (TB, L1, KP): column k holds xp[b, o*stride + k]; columns >= K
    # stay zero (their weight rows are zero too).  Built with lane-selects on
    # an 8-wide buffer — the heavy x128-channel contraction runs on the MXU.
    span1 = (L1 - 1) * stride + 1
    lane = jax.lax.broadcasted_iota(jnp.int32, (TB, L1, KP), 2)
    im1 = jnp.zeros((TB, L1, KP), jnp.float32)
    for k in range(K):
        tap = xp[:, k: k + span1: stride]                      # (TB, L1)
        im1 = jnp.where(lane == k, tap[:, :, None], im1)
    h1 = jnp.dot(im1.reshape(TB * L1, KP).astype(cdt), w1,
                 preferred_element_type=jnp.float32)           # (TB*L1, 128) f32
    h1 = jnp.maximum(h1, 0.0).reshape(TB, L1, _CP)             # ReLU in f32

    # ---- circular halo along length (only 2*pad rows), then fused conv2 ---
    if pad > 0:
        h1p = jnp.concatenate([h1[:, L1 - pad:, :], h1, h1[:, :pad, :]],
                              axis=1)                          # (TB, L1+2p, 128)
    else:
        h1p = h1
    span2 = (L2 - 1) * stride + 1
    taps2 = [h1p[:, k: k + span2: stride, :] for k in range(K)]  # K x (TB, L2, 128)
    im2 = jnp.concatenate(taps2, axis=2)                       # (TB, L2, K*128)
    h2 = jnp.dot(im2.reshape(TB * L2, K * _CP).astype(cdt), w2,
                 preferred_element_type=jnp.float32)           # (TB*L2, 128) f32

    # ---- max over the spatial dim (torch dim=2); lane-dense store ---------
    out_ref[...] = jnp.max(h2.reshape(TB, L2, _OP), axis=1)    # (TB, 128)


def fully_conv_forward(x, w1_torch, w2_torch, *, padding, stride, kernel_size,
                       block_b=8, compute_dtype=jnp.bfloat16):
    """x: (B, L) f32; w1_torch: (C, 1, K); w2_torch: (10, C, K) -> (B, 10) f32."""
    B, L = x.shape
    C = w1_torch.shape[0]
    n_out = w2_torch.shape[0]
    K, pad = kernel_size, padding
    L1 = (L + 2 * pad - K) // stride + 1
    L2 = (L1 + 2 * pad - K) // stride + 1

    if pad > L or pad > L1:
        raise ValueError("circular padding must not exceed the signal length")
    if C > _CP or n_out > _OP:
        raise ValueError("channels / outputs exceed the 128-lane padding")

    KP = -(-K // 8) * 8                       # conv1 taps padded to sublane mult
    TB = -(-block_b // 8) * 8                 # batch tile, multiple of 8
    nb = pl.cdiv(B, TB)
    Bp = nb * TB

    # --- host-side layout plumbing: circular pad, batch pad, bf16 cast -----
    if pad > 0:
        xp = jnp.concatenate([x[:, L - pad:], x, x[:, :pad]], axis=1)
    else:
        xp = x
    if Bp > B:
        xp = jnp.pad(xp, ((0, Bp - B), (0, 0)))
    xp = xp.astype(compute_dtype)                                   # (Bp, L+2p)

    # --- weights: re-layout + zero-pad to lane-dense shapes ----------------
    w1_kc = jnp.transpose(w1_torch[:, 0, :].astype(jnp.float32), (1, 0))  # (K, C)
    w1p = (jnp.zeros((KP, _CP), jnp.float32).at[:K, :C].set(w1_kc)
           .astype(compute_dtype))                                        # (KP, 128)
    w2_kco = jnp.transpose(w2_torch.astype(jnp.float32), (2, 1, 0))       # (K, C, 10)
    w2f = (jnp.zeros((K, _CP, _OP), jnp.float32).at[:, :C, :n_out].set(w2_kco)
           .reshape(K * _CP, _OP).astype(compute_dtype))                  # (K*128, 128)

    kernel = partial(_fullyconv_kernel, TB=TB, L1=L1, L2=L2, K=K, KP=KP,
                     stride=stride, pad=pad)
    out_padded = pl.pallas_call(
        kernel,
        grid=(nb,),
        out_shape=jax.ShapeDtypeStruct((Bp, _OP), jnp.float32),
        in_specs=[
            pl.BlockSpec((TB, xp.shape[1]), lambda i: (i, 0)),   # batch-tiled input
            pl.BlockSpec((KP, _CP), lambda i: (0, 0)),           # resident weights
            pl.BlockSpec((K * _CP, _OP), lambda i: (0, 0)),      # resident weights
        ],
        out_specs=pl.BlockSpec((TB, _OP), lambda i: (i, 0)),     # lane-dense out
        compiler_params=pltpu.CompilerParams(
            dimension_semantics=("parallel",)),
    )(xp, w1p, w2f)

    return out_padded[:B, :n_out]


def _ref_forward(x, w1, w2, pad, stride):
    """NumPy reference matching PyTorch Conv1d(padding_mode='circular')."""
    B, L = x.shape
    C, _, K = w1.shape
    xp = np.concatenate([x[:, L - pad:], x, x[:, :pad]], axis=1) if pad else x
    L1 = (L + 2 * pad - K) // stride + 1
    h1 = np.zeros((B, C, L1), np.float64)
    for o in range(L1):
        seg = xp[:, o * stride: o * stride + K]                  # (B, K)
        h1[:, :, o] = seg @ w1[:, 0, :].T
    h1 = np.maximum(h1, 0.0)
    h1p = (np.concatenate([h1[:, :, L1 - pad:], h1, h1[:, :, :pad]], axis=2)
           if pad else h1)
    L2 = (L1 + 2 * pad - K) // stride + 1
    h2 = np.zeros((B, 10, L2), np.float64)
    for o in range(L2):
        seg = h1p[:, :, o * stride: o * stride + K]              # (B, C, K)
        h2[:, :, o] = np.einsum('bck,ock->bo', seg, w2)
    return h2.max(axis=2)                                        # (B, 10)


if __name__ == "__main__":
    # Small shapes consistent with the module: 1-D signal, conv1: 1->channels,
    # conv2: channels->10, circular padding, stride 1.  B=16 with TB=8 gives a
    # 2-step parallel grid (exercises the pipelined / megacore path).
    B, L = 16, 16
    channels, kernel_size, stride, padding = 8, 3, 1, 1

    key = jax.random.PRNGKey(0)
    kx, k1, k2 = jax.random.split(key, 3)

    def bf16_exact(a):
        # Pre-round test inputs to bf16-representable values so the only
        # quantisation in the bf16 MXU path is the h1 intermediate cast.
        return a.astype(jnp.bfloat16).astype(jnp.float32)

    x = bf16_exact(jax.random.normal(kx, (B, L), dtype=jnp.float32))
    w1_t = bf16_exact(0.5 * jax.random.normal(k1, (channels, 1, kernel_size),
                                              jnp.float32))
    w2_t = bf16_exact(0.5 * jax.random.normal(k2, (10, channels, kernel_size),
                                              jnp.float32))

    out = fully_conv_forward(x, w1_t, w2_t, padding=padding, stride=stride,
                             kernel_size=kernel_size, block_b=8,
                             compute_dtype=jnp.bfloat16)
    out = jax.block_until_ready(out)

    ref = _ref_forward(np.asarray(x, np.float64), np.asarray(w1_t, np.float64),
                       np.asarray(w2_t, np.float64), padding, stride)
    # Tolerance is set by the bf16 rounding of the h1 intermediate feeding the
    # conv2 MXU matmul (~1e-2 abs at these magnitudes); accumulation is f32.
    np.testing.assert_allclose(np.asarray(out), ref, rtol=4e-2, atol=4e-2)
    print("KERNEL_OK")
</pallas_src>

<mosaic_0001>
module attributes {stable_mosaic.version = 11 : i64} {
  func.func @_fullyconv_kernel(%arg0: i32, %arg1: memref<8x18xbf16, #tpu.memory_space<vmem>>, %arg2: memref<8x128xbf16, #tpu.memory_space<vmem>>, %arg3: memref<384x128xbf16, #tpu.memory_space<vmem>>, %arg4: memref<8x128xf32, #tpu.memory_space<vmem>>) attributes {dimension_semantics = [#tpu.dimension_semantics<parallel>], iteration_bounds = array<i64: 2>, scalar_prefetch = 0 : i64, scratch_operands = 0 : i64, tpu.core_type = #tpu.core_type<tc>, window_params = [{transform_indices = @transform_0, window_bounds = array<i64: 8, 18>}, {pipeline_mode = #tpu.pipeline_mode<synchronous>, transform_indices = @transform_1, window_bounds = array<i64: 8, 128>}, {pipeline_mode = #tpu.pipeline_mode<synchronous>, transform_indices = @transform_2, window_bounds = array<i64: 384, 128>}, {transform_indices = @transform_3, window_bounds = array<i64: 8, 128>}]} {
    %c0 = arith.constant 0 : index
    %c0_0 = arith.constant 0 : index
    %0 = vector.load %arg2[%c0, %c0_0] : memref<8x128xbf16, #tpu.memory_space<vmem>>, vector<8x128xbf16>
    %c0_1 = arith.constant 0 : index
    %c0_2 = arith.constant 0 : index
    %1 = vector.load %arg3[%c0_1, %c0_2] : memref<384x128xbf16, #tpu.memory_space<vmem>>, vector<384x128xbf16>
    %c0_3 = arith.constant 0 : index
    %c0_4 = arith.constant 0 : index
    %2 = vector.load %arg1[%c0_3, %c0_4] : memref<8x18xbf16, #tpu.memory_space<vmem>>, vector<8x18xbf16>
    %3 = arith.extf %2 : vector<8x18xbf16> to vector<8x18xf32>
    %4 = tpu.iota {dimensions = array<i32: 2>} : vector<8x16x8xi32>
    %cst = arith.constant 0.000000e+00 : f32
    %5 = vector.broadcast %cst : f32 to vector<8x16x8xf32>
    %6 = vector.extract_strided_slice %3 {offsets = [0, 0], sizes = [8, 16], strides = [1, 1]} : vector<8x18xf32> to vector<8x16xf32>
    %c0_i32 = arith.constant 0 : i32
    %7 = vector.broadcast %c0_i32 : i32 to vector<8x16x8xi32>
    %8 = arith.cmpi eq, %4, %7 : vector<8x16x8xi32>
    %9 = vector.shape_cast %6 : vector<8x16xf32> to vector<8x16x1xf32>
    %10 = vector.shape_cast %9 : vector<8x16x1xf32> to vector<8x16x1xf32>
    %11 = vector.broadcast %10 : vector<8x16x1xf32> to vector<8x16x8xf32>
    %12 = arith.select %8, %11, %5 : vector<8x16x8xi1>, vector<8x16x8xf32>
    %13 = vector.extract_strided_slice %3 {offsets = [0, 1], sizes = [8, 16], strides = [1, 1]} : vector<8x18xf32> to vector<8x16xf32>
    %c1_i32 = arith.constant 1 : i32
    %14 = vector.broadcast %c1_i32 : i32 to vector<8x16x8xi32>
    %15 = arith.cmpi eq, %4, %14 : vector<8x16x8xi32>
    %16 = vector.shape_cast %13 : vector<8x16xf32> to vector<8x16x1xf32>
    %17 = vector.shape_cast %16 : vector<8x16x1xf32> to vector<8x16x1xf32>
    %18 = vector.broadcast %17 : vector<8x16x1xf32> to vector<8x16x8xf32>
    %19 = arith.select %15, %18, %12 : vector<8x16x8xi1>, vector<8x16x8xf32>
    %20 = vector.extract_strided_slice %3 {offsets = [0, 2], sizes = [8, 16], strides = [1, 1]} : vector<8x18xf32> to vector<8x16xf32>
    %c2_i32 = arith.constant 2 : i32
    %21 = vector.broadcast %c2_i32 : i32 to vector<8x16x8xi32>
    %22 = arith.cmpi eq, %4, %21 : vector<8x16x8xi32>
    %23 = vector.shape_cast %20 : vector<8x16xf32> to vector<8x16x1xf32>
    %24 = vector.shape_cast %23 : vector<8x16x1xf32> to vector<8x16x1xf32>
    %25 = vector.broadcast %24 : vector<8x16x1xf32> to vector<8x16x8xf32>
    %26 = arith.select %22, %25, %19 : vector<8x16x8xi1>, vector<8x16x8xf32>
    %27 = vector.shape_cast %26 : vector<8x16x8xf32> to vector<128x8xf32>
    %28 = arith.truncf %27 : vector<128x8xf32> to vector<128x8xbf16>
    %cst_5 = arith.constant dense<0.000000e+00> : vector<128x128xf32>
    %29 = tpu.matmul %28, %0, %cst_5 {dimension_numbers = #tpu.dot_dimension_numbers<[1], [0], [0], [1], [0, 0, 1, 1], [], []>} : vector<128x8xbf16>, vector<8x128xbf16>, vector<128x128xf32> -> vector<128x128xf32>
    %cst_6 = arith.constant 0.000000e+00 : f32
    %30 = vector.broadcast %cst_6 : f32 to vector<128x128xf32>
    %31 = arith.maximumf %29, %30 : vector<128x128xf32>
    %32 = vector.shape_cast %31 : vector<128x128xf32> to vector<8x16x128xf32>
    %33 = vector.extract_strided_slice %32 {offsets = [0, 15, 0], sizes = [8, 1, 128], strides = [1, 1, 1]} : vector<8x16x128xf32> to vector<8x1x128xf32>
    %34 = vector.extract_strided_slice %32 {offsets = [0, 0, 0], sizes = [8, 1, 128], strides = [1, 1, 1]} : vector<8x16x128xf32> to vector<8x1x128xf32>
    %35 = tpu.concatenate %33, %32, %34 in 1 : vector<8x1x128xf32>, vector<8x16x128xf32>, vector<8x1x128xf32> -> vector<8x18x128xf32>
    %36 = vector.extract_strided_slice %35 {offsets = [0, 0, 0], sizes = [8, 16, 128], strides = [1, 1, 1]} : vector<8x18x128xf32> to vector<8x16x128xf32>
    %37 = vector.extract_strided_slice %35 {offsets = [0, 1, 0], sizes = [8, 16, 128], strides = [1, 1, 1]} : vector<8x18x128xf32> to vector<8x16x128xf32>
    %38 = vector.extract_strided_slice %35 {offsets = [0, 2, 0], sizes = [8, 16, 128], strides = [1, 1, 1]} : vector<8x18x128xf32> to vector<8x16x128xf32>
    %39 = tpu.concatenate %36, %37, %38 in 2 : vector<8x16x128xf32>, vector<8x16x128xf32>, vector<8x16x128xf32> -> vector<8x16x384xf32>
    %40 = vector.shape_cast %39 : vector<8x16x384xf32> to vector<128x384xf32>
    %41 = arith.truncf %40 : vector<128x384xf32> to vector<128x384xbf16>
    %cst_7 = arith.constant dense<0.000000e+00> : vector<128x128xf32>
    %42 = tpu.matmul %41, %1, %cst_7 {dimension_numbers = #tpu.dot_dimension_numbers<[1], [0], [0], [1], [0, 0, 1, 1], [], []>} : vector<128x384xbf16>, vector<384x128xbf16>, vector<128x128xf32> -> vector<128x128xf32>
    %43 = vector.shape_cast %42 : vector<128x128xf32> to vector<8x16x128xf32>
    %cst_8 = arith.constant dense<0xFF800000> : vector<8x128xf32>
    %44 = vector.multi_reduction <maximumf>, %43, %cst_8 [1] : vector<8x16x128xf32> to vector<8x128xf32>
    %c0_9 = arith.constant 0 : index
    %c0_10 = arith.constant 0 : index
    %45 = vector.load %arg4[%c0_9, %c0_10] : memref<8x128xf32, #tpu.memory_space<vmem>>, vector<8x128xf32>
    tpu.vector_store %arg4[%c0_9, %c0_10], %44 {strides = array<i32>} : memref<8x128xf32, #tpu.memory_space<vmem>>, vector<8x128xf32>,
    return
  }
  func.func @transform_0(%arg0: i32) -> (i32, i32) {
    %c0_i32 = arith.constant 0 : i32
    %c0_i32_0 = arith.constant 0 : i32
    return %arg0, %c0_i32 : i32, i32
  }
  func.func @transform_1(%arg0: i32) -> (i32, i32) {
    %c0_i32 = arith.constant 0 : i32
    %c0_i32_0 = arith.constant 0 : i32
    %c0_i32_1 = arith.constant 0 : i32
    return %c0_i32, %c0_i32_0 : i32, i32
  }
  func.func @transform_2(%arg0: i32) -> (i32, i32) {
    %c0_i32 = arith.constant 0 : i32
    %c0_i32_0 = arith.constant 0 : i32
    %c0_i32_1 = arith.constant 0 : i32
    return %c0_i32, %c0_i32_0 : i32, i32
  }
  func.func @transform_3(%arg0: i32) -> (i32, i32) {
    %c0_i32 = arith.constant 0 : i32
    %c0_i32_0 = arith.constant 0 : i32
    return %arg0, %c0_i32 : i32, i32
  }
}

</mosaic_0001>

<llo_original>
// kernel: tpu_custom_call.1
$region0: #{tpu_custom_call.1}
  #allocation0 [shape = 'u32[]', space=smem, size = 0x4, offset = 0x4, fixed_abs, tag = 'smem constant byte address 0x4 - core index']
  #allocation1 [shape = 'u32[144,128]{1,0:T(1,128)}', space=vmem, size = 0x12000, scoped, tag = 'internal scratch']
  %s0 = inlined_call_operand.hbm [shape: bf16[16,18], index: 0, kind: input, shape index: {}]
  %s1 = inlined_call_operand.hbm [shape: bf16[8,128], index: 1, kind: input, shape index: {}]
  %s2 = inlined_call_operand.hbm [shape: bf16[384,128], index: 2, kind: input, shape index: {}]
  %s3 = inlined_call_operand.hbm [shape: f32[16,128], index: 3, kind: output, shape index: {}]
  %s4 = sld [smem:[#allocation0]]
  $region57: #{tpu_custom_call.1} parent=0
    _
  %s6 = ssub.s32 1, %s4
  %s7 = scalar_select 0, %s6, %s4
  $region1: #{tpu_custom_call.1} parent=0
    #allocation2 [shape = 'u8[4096]{0}', space=vmem, size = 0x1000, scoped, tag = 'input window, operand 0']
    #allocation3 [shape = 's32[2]{0}', space=sflag, size = 0x8, scoped, tag = 'scoped memory for tpu_custom_call.1']
    #allocation4 [shape = 's32[2]{0}', space=sflag, size = 0x8, scoped, tag = 'scoped memory for tpu_custom_call.1']
    #allocation5 [shape = 'u8[2048]{0}', space=vmem, size = 0x800, scoped, tag = 'input window, operand 1, single buffered']
    #allocation6 [shape = 's32[1]{0}', space=sflag, size = 0x4, scoped, tag = 'scoped memory for tpu_custom_call.1']
    #allocation7 [shape = 'u8[98304]{0}', space=vmem, size = 0x18000, scoped, tag = 'input window, operand 2, single buffered']
    #allocation8 [shape = 'u8[8192]{0}', space=vmem, size = 0x2000, scoped, tag = 'output window, operand 0']
    %8 = vsyncpa [#allocation3], 0
    %s9 = scalar_lea.sflag [#allocation3], 1
    %10 = vsyncpa %s9, 0
    %11 = vsyncpa [#allocation6], 0
    %12 = vsyncpa [#allocation4], 0
    %s13 = scalar_lea.sflag [#allocation4], 1
    %14 = vsyncpa %s13, 0
    loop: start=0, step=1, limit=4
    $region2: #{tpu_custom_call.1} parent=1 // loop_pre_header
      _
    $region3: #{tpu_custom_call.1} parent=1 // loop_header
      %s16 = sphi 0, %s20
      %p17 = scmp.ge.s32.totalorder %s16, 4
      %s26 = sphi 0, %s28
      %s29 = sphi 0, %s26
      %s30 = sphi 0, %s29
      %s46 = sphi 0, %s30
      %s50 = sphi 0, %s50
      %s52 = sphi 0, %s50
      %s53 = sphi 0, %s52
      %s67 = sphi 0, %s53
      %s71 = sphi 0, %s71
      %s73 = sphi 0, %s71
      %s74 = sphi 0, %s73
      %s88 = sphi 0, %s74
      %s94 = sphi 0, %s96
      %s97 = sphi 0, %s94
      %s98 = sphi 0, %s97
      %s114 = sphi 0, %s98
    $region4: #{tpu_custom_call.1} parent=1 // loop_header_branch
      %19 = sbr.rel (%p17) target = $region8
    $region5: #{tpu_custom_call.1} parent=1 // loop_body
      %s21 = ssub.s32 %s16, 1
      %s22 = ssub.s32 %s16, 2
      %s23 = sadd.s32 %s16, 1
      %s24 = ssub.s32 %s16, %s23
      %p25 = scmp.eq.s32.totalorder %s24, 0
      %s27 = sadd.s32 %s26, 1
      %s28 = scalar_select %p25, %s26, %s27
      %p31 = pneg %p25
      %p32 = scmp.eq.s32.totalorder %s16, 1
      %p33 = por %p31, %p32
      %p34 = scmp.ne.s32.totalorder %s26, %s29
      %p35 = scmp.eq.s32.totalorder %s16, 0
      %p36 = por %p34, %p35
      %p37 = scmp.ne.s32.totalorder %s26, %s29
      %p38 = scmp.eq.s32.totalorder %s21, 1
      %p39 = por %p37, %p38
      %p40 = scmp.ne.s32.totalorder %s29, %s30
      %p41 = scmp.eq.s32.totalorder %s21, 0
      %p42 = por %p40, %p41
      %p43 = scmp.ne.s32.totalorder %s29, %s30
      %p44 = scmp.eq.s32.totalorder %s22, 1
      %p45 = por %p43, %p44
      %p47 = scmp.ne.s32.totalorder %s30, %s46
      %p48 = scmp.eq.s32.totalorder %s22, 0
      %p49 = por %p47, %p48
      %s51 = sadd.s32 %s50, 1
      %p54 = scmp.eq.s32.totalorder %s16, 1
      %p55 = scmp.ne.s32.totalorder %s50, %s52
      %p56 = scmp.eq.s32.totalorder %s16, 0
      %p57 = por %p55, %p56
      %p58 = scmp.ne.s32.totalorder %s50, %s52
      %p59 = scmp.eq.s32.totalorder %s21, 1
      %p60 = por %p58, %p59
      %p61 = scmp.ne.s32.totalorder %s52, %s53
      %p62 = scmp.eq.s32.totalorder %s21, 0
      %p63 = por %p61, %p62
      %p64 = scmp.ne.s32.totalorder %s52, %s53
      %p65 = scmp.eq.s32.totalorder %s22, 1
      %p66 = por %p64, %p65
      %p68 = scmp.ne.s32.totalorder %s53, %s67
      %p69 = scmp.eq.s32.totalorder %s22, 0
      %p70 = por %p68, %p69
      %s72 = sadd.s32 %s71, 1
      %p75 = scmp.eq.s32.totalorder %s16, 1
      %p76 = scmp.ne.s32.totalorder %s71, %s73
      %p77 = scmp.eq.s32.totalorder %s16, 0
      %p78 = por %p76, %p77
      %p79 = scmp.ne.s32.totalorder %s71, %s73
      %p80 = scmp.eq.s32.totalorder %s21, 1
      %p81 = por %p79, %p80
      %p82 = scmp.ne.s32.totalorder %s73, %s74
      %p83 = scmp.eq.s32.totalorder %s21, 0
      %p84 = por %p82, %p83
      %p85 = scmp.ne.s32.totalorder %s73, %s74
      %p86 = scmp.eq.s32.totalorder %s22, 1
      %p87 = por %p85, %p86
      %p89 = scmp.ne.s32.totalorder %s74, %s88
      %p90 = scmp.eq.s32.totalorder %s22, 0
      %p91 = por %p89, %p90
      %s92 = ssub.s32 %s16, %s23
      %p93 = scmp.eq.s32.totalorder %s92, 0
      %s95 = sadd.s32 %s94, 1
      %s96 = scalar_select %p93, %s94, %s95
      %p99 = pneg %p93
      %p100 = scmp.eq.s32.totalorder %s16, 1
      %p101 = por %p99, %p100
      %p102 = scmp.ne.s32.totalorder %s94, %s97
      %p103 = scmp.eq.s32.totalorder %s16, 0
      %p104 = por %p102, %p103
      %p105 = scmp.ne.s32.totalorder %s94, %s97
      %p106 = scmp.eq.s32.totalorder %s21, 1
      %p107 = por %p105, %p106
      %p108 = scmp.ne.s32.totalorder %s97, %s98
      %p109 = scmp.eq.s32.totalorder %s21, 0
      %p110 = por %p108, %p109
      %p111 = scmp.ne.s32.totalorder %s97, %s98
      %p112 = scmp.eq.s32.totalorder %s22, 1
      %p113 = por %p111, %p112
      %p115 = scmp.ne.s32.totalorder %s98, %s114
      %p116 = scmp.eq.s32.totalorder %s22, 0
      %p117 = por %p115, %p116
      %p118 = scmp.le.s32.totalorder 1, %s16
      %p119 = scmp.lt.s32.totalorder %s16, 3
      %p120 = pnand %p118, %p119
      %p121 = pneg %p120
      // Predicated region
      $region9: #{tpu_custom_call.1} parent=5 // pred_check
        _
      $region10: #{tpu_custom_call.1} parent=5 // pred_check_branch
        %123 = sbr.rel (%p120) target = $region12
      $region11: #{tpu_custom_call.1} parent=5 // pred_region
        %s124 = ssub.s32 %s16, 1
        // Predicated region
        $region13: #{tpu_custom_call.1} parent=11 // pred_check
          %p125 = pneg %p63
        $region14: #{tpu_custom_call.1} parent=11 // pred_check_branch
          %127 = sbr.rel (%p125) target = $region16
        $region15: #{tpu_custom_call.1} parent=11 // pred_region
          %s129 = ssub.s32 64, 64
          %130 = vsyncadd [#allocation6], %s129
          %s132 = sshll.u32 [#allocation5], 4
          %s133 = int_to_ptr.vmem [resolvable:$true] %s132
          %135 = dma.hbm_to_vmem [thread:$0]  %s1, 64, %s133, [#allocation6]
        $region16: #{tpu_custom_call.1} parent=11 // pred_fallthru
          _
        // Predicated region
        $region17: #{tpu_custom_call.1} parent=11 // pred_check
          %p136 = pneg %p84
        $region18: #{tpu_custom_call.1} parent=11 // pred_check_branch
          %138 = sbr.rel (%p136) target = $region20
        $region19: #{tpu_custom_call.1} parent=11 // pred_region
          %s140 = ssub.s32 3072, 3072
          %141 = vsyncadd [#allocation6], %s140
          %s142 = sshll.u32 [#allocation7], 4
          %s143 = int_to_ptr.vmem [resolvable:$true] %s142
          %148 = dma.hbm_to_vmem [thread:$0]  %s2, 3072, %s143, [#allocation6], 64, 64, 4
        $region20: #{tpu_custom_call.1} parent=11 // pred_fallthru
          _
      $region12: #{tpu_custom_call.1} parent=5 // pred_fallthru
        _
      %p149 = scmp.lt.s32.totalorder %s16, 2
      // Predicated region
      $region21: #{tpu_custom_call.1} parent=5 // pred_check
        %p150 = pneg %p149
      $region22: #{tpu_custom_call.1} parent=5 // pred_check_branch
        %152 = sbr.rel (%p150) target = $region24
      $region23: #{tpu_custom_call.1} parent=5 // pred_region
        // Predicated region
        $region25: #{tpu_custom_call.1} parent=23 // pred_check
          %p153 = pneg %p36
        $region26: #{tpu_custom_call.1} parent=23 // pred_check_branch
          %155 = sbr.rel (%p153) target = $region28
        $region27: #{tpu_custom_call.1} parent=23 // pred_region
          %s156 = sand.u32 %s26, 1
          %s157 = scalar_lea.sflag [#allocation3], %s156
          %s158 = sand.u32 %s26, 1
          %s159 = smul.addr %s158, 4
          %s160 = scalar_lea.vmem [#allocation2], %s159
          %s162 = ssub.s32 64, 64
          %163 = vsyncadd %s157, %s162
          %s164 = smul.addr %s16, 64
          %s165 = scalar_lea.hbm %s0, %s164
          %s167 = sshll.u32 %s160, 4
          %s168 = int_to_ptr.vmem [resolvable:$true] %s167
          %170 = dma.hbm_to_vmem [thread:$0]  %s165, 64, %s168, %s157
        $region28: #{tpu_custom_call.1} parent=23 // pred_fallthru
          _
      $region24: #{tpu_custom_call.1} parent=5 // pred_fallthru
        _
      %p171 = scmp.le.s32.totalorder 1, %s16
      %p172 = scmp.lt.s32.totalorder %s16, 3
      %p173 = pnand %p171, %p172
      %p174 = pneg %p173
      // Predicated region
      $region29: #{tpu_custom_call.1} parent=5 // pred_check
        _
      $region30: #{tpu_custom_call.1} parent=5 // pred_check_branch
        %176 = sbr.rel (%p173) target = $region32
      $region31: #{tpu_custom_call.1} parent=5 // pred_region
        %s177 = ssub.s32 %s16, 1
        %s178 = sand.u32 %s29, 1
        %s179 = scalar_lea.sflag [#allocation3], %s178
        %s180 = sand.u32 %s29, 1
        %s181 = smul.addr %s180, 4
        %s182 = scalar_lea.vmem [#allocation2], %s181
        // Predicated region
        $region33: #{tpu_custom_call.1} parent=31 // pred_check
          %p183 = pneg %p42
        $region34: #{tpu_custom_call.1} parent=31 // pred_check_branch
          %185 = sbr.rel (%p183) target = $region36
        $region35: #{tpu_custom_call.1} parent=31 // pred_region
          %186 = dma.done %s179, 64
        $region36: #{tpu_custom_call.1} parent=31 // pred_fallthru
          _
        // Predicated region
        $region37: #{tpu_custom_call.1} parent=31 // pred_check
          %p187 = pneg %p63
        $region38: #{tpu_custom_call.1} parent=31 // pred_check_branch
          %189 = sbr.rel (%p187) target = $region40
        $region39: #{tpu_custom_call.1} parent=31 // pred_region
          %190 = dma.done [#allocation6], 64
        $region40: #{tpu_custom_call.1} parent=31 // pred_fallthru
          _
        // Predicated region
        $region41: #{tpu_custom_call.1} parent=31 // pred_check
          %p191 = pneg %p84
        $region42: #{tpu_custom_call.1} parent=31 // pred_check_branch
          %193 = sbr.rel (%p191) target = $region44
        $region43: #{tpu_custom_call.1} parent=31 // pred_region
          %194 = dma.done [#allocation6], 3072
        $region44: #{tpu_custom_call.1} parent=31 // pred_fallthru
          _
        %s195 = sand.u32 %s29, 1
        %s196 = scalar_lea.sflag [#allocation3], %s195
        %s197 = sand.u32 %s29, 1
        %s198 = smul.addr %s197, 4
        %s199 = scalar_lea.vmem [#allocation2], %s198
        %p200 = pneg %p42
        %p201 = pneg %p39
        %p202 = pneg %p63
        %p203 = pneg %p60
        %p204 = pneg %p84
        %p205 = pneg %p81
        %p206 = pneg %p110
        %p207 = pneg %p107
        %s208 = sand.u32 %s97, 1
        %s209 = scalar_lea.sflag [#allocation4], %s208
        %s210 = sand.u32 %s97, 1
        %s211 = smul.addr %s210, 8
        %s212 = scalar_lea.vmem [#allocation8], %s211
        %v214 = vld [vmem:[#allocation5] sm:$0xf]
        %v215 = vld [vmem:[#allocation7] sm:$0xf]
        %v216 = vld [vmem:[#allocation7 + $0x4] sm:$0xf]
        %v217 = vld [vmem:[#allocation7 + $0x8] sm:$0xf]
        %v218 = vld [vmem:[#allocation7 + $0xc] sm:$0xf]
        %v219 = vld [vmem:[#allocation7 + $0x10] sm:$0xf]
        %v220 = vld [vmem:[#allocation7 + $0x14] sm:$0xf]
        %v221 = vld [vmem:[#allocation7 + $0x18] sm:$0xf]
        %v222 = vld [vmem:[#allocation7 + $0x1c] sm:$0xf]
        %v223 = vld [vmem:[#allocation7 + $0x20] sm:$0xf]
        %v224 = vld [vmem:[#allocation7 + $0x24] sm:$0xf]
        %v225 = vld [vmem:[#allocation7 + $0x28] sm:$0xf]
        %v226 = vld [vmem:[#allocation7 + $0x2c] sm:$0xf]
        %v227 = vld [vmem:[#allocation7 + $0x30] sm:$0xf]
        %v228 = vld [vmem:[#allocation7 + $0x34] sm:$0xf]
        %v229 = vld [vmem:[#allocation7 + $0x38] sm:$0xf]
        %v230 = vld [vmem:[#allocation7 + $0x3c] sm:$0xf]
        %v231 = vld [vmem:[#allocation7 + $0x40] sm:$0xf]
        %v232 = vld [vmem:[#allocation7 + $0x44] sm:$0xf]
        %v233 = vld [vmem:[#allocation7 + $0x48] sm:$0xf]
        %v234 = vld [vmem:[#allocation7 + $0x4c] sm:$0xf]
        %v235 = vld [vmem:[#allocation7 + $0x50] sm:$0xf]
        %v236 = vld [vmem:[#allocation7 + $0x54] sm:$0xf]
        %v237 = vld [vmem:[#allocation7 + $0x58] sm:$0xf]
        %v238 = vld [vmem:[#allocation7 + $0x5c] sm:$0xf]
        %v239 = vld [vmem:[#allocation7 + $0x60] sm:$0xf]
        %v240 = vld [vmem:[#allocation7 + $0x64] sm:$0xf]
        %v241 = vld [vmem:[#allocation7 + $0x68] sm:$0xf]
        %v242 = vld [vmem:[#allocation7 + $0x6c] sm:$0xf]
        %v243 = vld [vmem:[#allocation7 + $0x70] sm:$0xf]
        %v244 = vld [vmem:[#allocation7 + $0x74] sm:$0xf]
        %v245 = vld [vmem:[#allocation7 + $0x78] sm:$0xf]
        %v246 = vld [vmem:[#allocation7 + $0x7c] sm:$0xf]
        %v247 = vld [vmem:[#allocation7 + $0x80] sm:$0xf]
        %v248 = vld [vmem:[#allocation7 + $0x84] sm:$0xf]
        %v249 = vld [vmem:[#allocation7 + $0x88] sm:$0xf]
        %v250 = vld [vmem:[#allocation7 + $0x8c] sm:$0xf]
        %v251 = vld [vmem:[#allocation7 + $0x90] sm:$0xf]
        %v252 = vld [vmem:[#allocation7 + $0x94] sm:$0xf]
        %v253 = vld [vmem:[#allocation7 + $0x98] sm:$0xf]
        %v254 = vld [vmem:[#allocation7 + $0x9c] sm:$0xf]
        %v255 = vld [vmem:[#allocation7 + $0xa0] sm:$0xf]
        %v256 = vld [vmem:[#allocation7 + $0xa4] sm:$0xf]
        %v257 = vld [vmem:[#allocation7 + $0xa8] sm:$0xf]
        %v258 = vld [vmem:[#allocation7 + $0xac] sm:$0xf]
        %v259 = vld [vmem:[#allocation7 + $0xb0] sm:$0xf]
        %v260 = vld [vmem:[#allocation7 + $0xb4] sm:$0xf]
        %v261 = vld [vmem:[#allocation7 + $0xb8] sm:$0xf]
        %v262 = vld [vmem:[#allocation7 + $0xbc] sm:$0xf]
        %v263 = vld [vmem:[%s182] sm:$0xf]
        %v264 = vunpack.c.l.bf16 %v263
        %v265 = vlaneseq
        %v266 = vand.u32 %v265, 127
        %vm267 = vcmp.eq.s32.totalorder %v266, 0
        %v268 = vlaneseq
        %v269 = vshrl.u32 %v268, 7
        %v270 = vsub.s32 0, %v269
        %v271 = vrot.slane %v264, %v270
        %273 = vbcast.lane.b32.xlu0 %v271, 256
        %v274 = vpop.permute.xlu0 %273
        %s276 = sor.u32 256, 8
        %277 = vbcast.lane.b32.xlu0 %v271, %s276
        %v278 = vpop.permute.xlu0 %277
        %v279 = vlaneseq
        %v280 = vshrl.u32 %v279, 7
        %v281 = vsub.s32 1, %v280
        %v282 = vrot.slane %v264, %v281
        %284 = vbcast.lane.b32.xlu0 %v282, 256
        %v285 = vpop.permute.xlu0 %284
        %s287 = sor.u32 256, 8
        %288 = vbcast.lane.b32.xlu0 %v282, %s287
        %v289 = vpop.permute.xlu0 %288
        %v290 = vlaneseq
        %v291 = vshrl.u32 %v290, 7
        %v292 = vsub.s32 2, %v291
        %v293 = vrot.slane %v264, %v292
        %295 = vbcast.lane.b32.xlu0 %v293, 256
        %v296 = vpop.permute.xlu0 %295
        %s298 = sor.u32 256, 8
        %299 = vbcast.lane.b32.xlu0 %v293, %s298
        %v300 = vpop.permute.xlu0 %299
        %v301 = vlaneseq
        %v302 = vshrl.u32 %v301, 7
        %v303 = vsub.s32 3, %v302
        %v304 = vrot.slane %v264, %v303
        %306 = vbcast.lane.b32.xlu0 %v304, 256
        %v307 = vpop.permute.xlu0 %306
        %s309 = sor.u32 256, 8
        %310 = vbcast.lane.b32.xlu0 %v304, %s309
        %v311 = vpop.permute.xlu0 %310
        %v312 = vlaneseq
        %v313 = vshrl.u32 %v312, 7
        %v314 = vsub.s32 4, %v313
        %v315 = vrot.slane %v264, %v314
        %317 = vbcast.lane.b32.xlu0 %v315, 256
        %v318 = vpop.permute.xlu0 %317
        %s320 = sor.u32 256, 8
        %321 = vbcast.lane.b32.xlu0 %v315, %s320
        %v322 = vpop.permute.xlu0 %321
        %v323 = vlaneseq
        %v324 = vshrl.u32 %v323, 7
        %v325 = vsub.s32 5, %v324
        %v326 = vrot.slane %v264, %v325
        %328 = vbcast.lane.b32.xlu0 %v326, 256
        %v329 = vpop.permute.xlu0 %328
        %s331 = sor.u32 256, 8
        %332 = vbcast.lane.b32.xlu0 %v326, %s331
        %v333 = vpop.permute.xlu0 %332
        %v334 = vlaneseq
        %v335 = vshrl.u32 %v334, 7
        %v336 = vsub.s32 6, %v335
        %v337 = vrot.slane %v264, %v336
        %339 = vbcast.lane.b32.xlu0 %v337, 256
        %v340 = vpop.permute.xlu0 %339
        %s342 = sor.u32 256, 8
        %343 = vbcast.lane.b32.xlu0 %v337, %s342
        %v344 = vpop.permute.xlu0 %343
        %v345 = vlaneseq
        %v346 = vshrl.u32 %v345, 7
        %v347 = vsub.s32 7, %v346
        %v348 = vrot.slane %v264, %v347
        %350 = vbcast.lane.b32.xlu0 %v348, 256
        %v351 = vpop.permute.xlu0 %350
        %s353 = sor.u32 256, 8
        %354 = vbcast.lane.b32.xlu0 %v348, %s353
        %v355 = vpop.permute.xlu0 %354
        %v356 = vsel %vm267, %v274, 0.0
        %v357 = vsel %vm267, %v278, 0.0
        %v358 = vsel %vm267, %v285, 0.0
        %v359 = vsel %vm267, %v289, 0.0
        %v360 = vsel %vm267, %v296, 0.0
        %v361 = vsel %vm267, %v300, 0.0
        %v362 = vsel %vm267, %v307, 0.0
        %v363 = vsel %vm267, %v311, 0.0
        %v364 = vsel %vm267, %v318, 0.0
        %v365 = vsel %vm267, %v322, 0.0
        %v366 = vsel %vm267, %v329, 0.0
        %v367 = vsel %vm267, %v333, 0.0
        %v368 = vsel %vm267, %v340, 0.0
        %v369 = vsel %vm267, %v344, 0.0
        %v370 = vsel %vm267, %v351, 0.0
        %v371 = vsel %vm267, %v355, 0.0
        %vm372 = vcmp.eq.s32.totalorder %v266, 1
        %s374 = sor.u32 256, 1
        %375 = vbcast.lane.b32.xlu0 %v271, %s374
        %v376 = vpop.permute.xlu0 %375
        %s378 = sor.u32 256, 9
        %379 = vbcast.lane.b32.xlu0 %v271, %s378
        %v380 = vpop.permute.xlu0 %379
        %s382 = sor.u32 256, 1
        %383 = vbcast.lane.b32.xlu0 %v282, %s382
        %v384 = vpop.permute.xlu0 %383
        %s386 = sor.u32 256, 9
        %387 = vbcast.lane.b32.xlu0 %v282, %s386
        %v388 = vpop.permute.xlu0 %387
        %s390 = sor.u32 256, 1
        %391 = vbcast.lane.b32.xlu0 %v293, %s390
        %v392 = vpop.permute.xlu0 %391
        %s394 = sor.u32 256, 9
        %395 = vbcast.lane.b32.xlu0 %v293, %s394
        %v396 = vpop.permute.xlu0 %395
        %s398 = sor.u32 256, 1
        %399 = vbcast.lane.b32.xlu0 %v304, %s398
        %v400 = vpop.permute.xlu0 %399
        %s402 = sor.u32 256, 9
        %403 = vbcast.lane.b32.xlu0 %v304, %s402
        %v404 = vpop.permute.xlu0 %403
        %s406 = sor.u32 256, 1
        %407 = vbcast.lane.b32.xlu0 %v315, %s406
        %v408 = vpop.permute.xlu0 %407
        %s410 = sor.u32 256, 9
        %411 = vbcast.lane.b32.xlu0 %v315, %s410
        %v412 = vpop.permute.xlu0 %411
        %s414 = sor.u32 256, 1
        %415 = vbcast.lane.b32.xlu0 %v326, %s414
        %v416 = vpop.permute.xlu0 %415
        %s418 = sor.u32 256, 9
        %419 = vbcast.lane.b32.xlu0 %v326, %s418
        %v420 = vpop.permute.xlu0 %419
        %s422 = sor.u32 256, 1
        %423 = vbcast.lane.b32.xlu0 %v337, %s422
        %v424 = vpop.permute.xlu0 %423
        %s426 = sor.u32 256, 9
        %427 = vbcast.lane.b32.xlu0 %v337, %s426
        %v428 = vpop.permute.xlu0 %427
        %s430 = sor.u32 256, 1
        %431 = vbcast.lane.b32.xlu0 %v348, %s430
        %v432 = vpop.permute.xlu0 %431
        %s434 = sor.u32 256, 9
        %435 = vbcast.lane.b32.xlu0 %v348, %s434
        %v436 = vpop.permute.xlu0 %435
        %v437 = vsel %vm372, %v376, %v356
        %v438 = vsel %vm372, %v380, %v357
        %v439 = vsel %vm372, %v384, %v358
        %v440 = vsel %vm372, %v388, %v359
        %v441 = vsel %vm372, %v392, %v360
        %v442 = vsel %vm372, %v396, %v361
        %v443 = vsel %vm372, %v400, %v362
        %v444 = vsel %vm372, %v404, %v363
        %v445 = vsel %vm372, %v408, %v364
        %v446 = vsel %vm372, %v412, %v365
        %v447 = vsel %vm372, %v416, %v366
        %v448 = vsel %vm372, %v420, %v367
        %v449 = vsel %vm372, %v424, %v368
        %v450 = vsel %vm372, %v428, %v369
        %v451 = vsel %vm372, %v432, %v370
        %v452 = vsel %vm372, %v436, %v371
        %vm453 = vcmp.eq.s32.totalorder %v266, 2
        %s455 = sor.u32 256, 2
        %456 = vbcast.lane.b32.xlu0 %v271, %s455
        %v457 = vpop.permute.xlu0 %456
        %s459 = sor.u32 256, 10
        %460 = vbcast.lane.b32.xlu0 %v271, %s459
        %v461 = vpop.permute.xlu0 %460
        %s463 = sor.u32 256, 2
        %464 = vbcast.lane.b32.xlu0 %v282, %s463
        %v465 = vpop.permute.xlu0 %464
        %s467 = sor.u32 256, 10
        %468 = vbcast.lane.b32.xlu0 %v282, %s467
        %v469 = vpop.permute.xlu0 %468
        %s471 = sor.u32 256, 2
        %472 = vbcast.lane.b32.xlu0 %v293, %s471
        %v473 = vpop.permute.xlu0 %472
        %s475 = sor.u32 256, 10
        %476 = vbcast.lane.b32.xlu0 %v293, %s475
        %v477 = vpop.permute.xlu0 %476
        %s479 = sor.u32 256, 2
        %480 = vbcast.lane.b32.xlu0 %v304, %s479
        %v481 = vpop.permute.xlu0 %480
        %s483 = sor.u32 256, 10
        %484 = vbcast.lane.b32.xlu0 %v304, %s483
        %v485 = vpop.permute.xlu0 %484
        %s487 = sor.u32 256, 2
        %488 = vbcast.lane.b32.xlu0 %v315, %s487
        %v489 = vpop.permute.xlu0 %488
        %s491 = sor.u32 256, 10
        %492 = vbcast.lane.b32.xlu0 %v315, %s491
        %v493 = vpop.permute.xlu0 %492
        %s495 = sor.u32 256, 2
        %496 = vbcast.lane.b32.xlu0 %v326, %s495
        %v497 = vpop.permute.xlu0 %496
        %s499 = sor.u32 256, 10
        %500 = vbcast.lane.b32.xlu0 %v326, %s499
        %v501 = vpop.permute.xlu0 %500
        %s503 = sor.u32 256, 2
        %504 = vbcast.lane.b32.xlu0 %v337, %s503
        %v505 = vpop.permute.xlu0 %504
        %s507 = sor.u32 256, 10
        %508 = vbcast.lane.b32.xlu0 %v337, %s507
        %v509 = vpop.permute.xlu0 %508
        %s511 = sor.u32 256, 2
        %512 = vbcast.lane.b32.xlu0 %v348, %s511
        %v513 = vpop.permute.xlu0 %512
        %s515 = sor.u32 256, 10
        %516 = vbcast.lane.b32.xlu0 %v348, %s515
        %v517 = vpop.permute.xlu0 %516
        %v518 = vsel %vm453, %v457, %v437
        %v519 = vsel %vm453, %v461, %v438
        %v520 = vsel %vm453, %v465, %v439
        %v521 = vsel %vm453, %v469, %v440
        %v522 = vsel %vm453, %v473, %v441
        %v523 = vsel %vm453, %v477, %v442
        %v524 = vsel %vm453, %v481, %v443
        %v525 = vsel %vm453, %v485, %v444
        %v526 = vsel %vm453, %v489, %v445
        %v527 = vsel %vm453, %v493, %v446
        %v528 = vsel %vm453, %v497, %v447
        %v529 = vsel %vm453, %v501, %v448
        %v530 = vsel %vm453, %v505, %v449
        %v531 = vsel %vm453, %v509, %v450
        %v532 = vsel %vm453, %v513, %v451
        %v533 = vsel %vm453, %v517, %v452
        %v534 = vpack.c.bf16 %v519, %v518
        %v535 = vpack.c.bf16 %v521, %v520
        %v536 = vpack.c.bf16 %v523, %v522
        %v537 = vpack.c.bf16 %v525, %v524
        %v538 = vpack.c.bf16 %v527, %v526
        %v539 = vpack.c.bf16 %v529, %v528
        %v540 = vpack.c.bf16 %v531, %v530
        %v541 = vpack.c.bf16 %v533, %v532
        %vm542 = vcmask 64512
        %v544 = vsel %vm542, %v534, 0
        %v547 = vsel %vm542, %v535, 0
        %v550 = vsel %vm542, %v536, 0
        %v553 = vsel %vm542, %v537, 0
        %v556 = vsel %vm542, %v538, 0
        %v559 = vsel %vm542, %v539, 0
        %v562 = vsel %vm542, %v540, 0
        %v565 = vsel %vm542, %v541, 0
        %vm567 = vcmask 1043456
        %v569 = vsel %vm567, %v214, 0
        %571 = vmatprep.subr.bf16.mxu0 0
        %572 = vmatpush1.bf16.msra.mxu0 %v569
        %573 = vmatprep.subr.bf16.mxu0 0
        %574 = vmatpush1.bf16.msra.mxu0 0
        %575 = vmatprep.subr.bf16.mxu0 0
        %576 = vmatpush1.bf16.msra.mxu0 0
        %577 = vmatprep.subr.bf16.mxu0 0
        %578 = vmatpush1.bf16.msra.mxu0 0
        %579 = vmatprep.subr.bf16.mxu0 0
        %580 = vmatpush1.bf16.msra.mxu0 0
        %581 = vmatprep.subr.bf16.mxu0 0
        %582 = vmatpush1.bf16.msra.mxu0 0
        %583 = vmatprep.subr.bf16.mxu0 0
        %584 = vmatpush1.bf16.msra.mxu0 0
        %585 = vmatprep.subr.bf16.mxu0 0
        %586 = vmatpush1.bf16.msra.mxu0 0
        %587 = vmatprep.subr.bf16.mxu0 0
        %588 = vmatpush1.bf16.msra.mxu0 0
        %589 = vmatprep.subr.bf16.mxu0 0
        %590 = vmatpush1.bf16.msra.mxu0 0
        %591 = vmatprep.subr.bf16.mxu0 0
        %592 = vmatpush1.bf16.msra.mxu0 0
        %593 = vmatprep.subr.bf16.mxu0 0
        %594 = vmatpush1.bf16.msra.mxu0 0
        %595 = vmatprep.subr.bf16.mxu0 0
        %596 = vmatpush1.bf16.msra.mxu0 0
        %597 = vmatprep.subr.bf16.mxu0 0
        %598 = vmatpush1.bf16.msra.mxu0 0
        %599 = vmatprep.subr.bf16.mxu0 0
        %600 = vmatpush1.bf16.msra.mxu0 0
        %601 = vmatprep.subr.bf16.mxu0 0
        %602 = vmatpush1.bf16.msra.mxu0 0
        %603 = vmatprep.mubr.bf16.mxu0 0
        %604 = vmatmul.mubr.bf16.gmra.mrb[0].mxu0 %v544
        %v605 = vpop.f32.mrb[0].mxu0
        %v606 = vadd.f32 0.0, %v605
        %v607 = vpop.f32.mrb[0].mxu0
        %v608 = vpop.f32.mrb[0].mxu0
        %v609 = vadd.f32 0.0, %v608
        %v610 = vpop.f32.mrb[0].mxu0
        %611 = vmatprep.mubr.bf16.mxu0 0
        %612 = vmatmul.mubr.bf16.gmra.mrb[0].mxu0 %v547
        %v613 = vpop.f32.mrb[0].mxu0
        %v614 = vadd.f32 0.0, %v613
        %v615 = vpop.f32.mrb[0].mxu0
        %v616 = vpop.f32.mrb[0].mxu0
        %v617 = vadd.f32 0.0, %v616
        %v618 = vpop.f32.mrb[0].mxu0
        %619 = vmatprep.mubr.bf16.mxu0 0
        %620 = vmatmul.mubr.bf16.gmra.mrb[0].mxu0 %v550
        %v621 = vpop.f32.mrb[0].mxu0
        %v622 = vadd.f32 0.0, %v621
        %v623 = vpop.f32.mrb[0].mxu0
        %v624 = vpop.f32.mrb[0].mxu0
        %v625 = vadd.f32 0.0, %v624
        %v626 = vpop.f32.mrb[0].mxu0
        %627 = vmatprep.mubr.bf16.mxu0 0
        %628 = vmatmul.mubr.bf16.gmra.mrb[0].mxu0 %v553
        %v629 = vpop.f32.mrb[0].mxu0
        %v630 = vadd.f32 0.0, %v629
        %v631 = vpop.f32.mrb[0].mxu0
        %v632 = vpop.f32.mrb[0].mxu0
        %v633 = vadd.f32 0.0, %v632
        %v634 = vpop.f32.mrb[0].mxu0
        %635 = vmatprep.mubr.bf16.mxu0 0
        %636 = vmatmul.mubr.bf16.gmra.mrb[0].mxu0 %v556
        %v637 = vpop.f32.mrb[0].mxu0
        %v638 = vadd.f32 0.0, %v637
        %v639 = vpop.f32.mrb[0].mxu0
        %v640 = vpop.f32.mrb[0].mxu0
        %v641 = vadd.f32 0.0, %v640
        %v642 = vpop.f32.mrb[0].mxu0
        %643 = vmatprep.mubr.bf16.mxu0 0
        %644 = vmatmul.mubr.bf16.gmra.mrb[0].mxu0 %v559
        %v645 = vpop.f32.mrb[0].mxu0
        %v646 = vadd.f32 0.0, %v645
        %v647 = vpop.f32.mrb[0].mxu0
        %v648 = vpop.f32.mrb[0].mxu0
        %v649 = vadd.f32 0.0, %v648
        %v650 = vpop.f32.mrb[0].mxu0
        %651 = vmatprep.mubr.bf16.mxu0 0
        %652 = vmatmul.mubr.bf16.gmra.mrb[0].mxu0 %v562
        %v653 = vpop.f32.mrb[0].mxu0
        %v654 = vadd.f32 0.0, %v653
        %v655 = vpop.f32.mrb[0].mxu0
        %v656 = vpop.f32.mrb[0].mxu0
        %v657 = vadd.f32 0.0, %v656
        %v658 = vpop.f32.mrb[0].mxu0
        %659 = vmatprep.mubr.bf16.mxu0 0
        %660 = vmatmul.mubr.bf16.gmra.mrb[0].mxu0 %v565
        %v661 = vpop.f32.mrb[0].mxu0
        %v662 = vadd.f32 0.0, %v661
        %v663 = vpop.f32.mrb[0].mxu0
        %v664 = vpop.f32.mrb[0].mxu0
        %v665 = vadd.f32 0.0, %v664
        %v666 = vpop.f32.mrb[0].mxu0
        %667 = vdwg.mxu0
        %v668 = vmax.f32 %v606, 0.0
        %v669 = vmax.f32 %v609, 0.0
        %v670 = vmax.f32 %v614, 0.0
        %v671 = vmax.f32 %v617, 0.0
        %v672 = vmax.f32 %v622, 0.0
        %v673 = vmax.f32 %v625, 0.0
        %v674 = vmax.f32 %v630, 0.0
        %v675 = vmax.f32 %v633, 0.0
        %v676 = vmax.f32 %v638, 0.0
        %v677 = vmax.f32 %v641, 0.0
        %v678 = vmax.f32 %v646, 0.0
        %v679 = vmax.f32 %v649, 0.0
        %v680 = vmax.f32 %v654, 0.0
        %v681 = vmax.f32 %v657, 0.0
        %v682 = vmax.f32 %v662, 0.0
        %v683 = vmax.f32 %v665, 0.0
        %v692 = vrot.slane %v669, 7
        %v693 = vrot.slane %v671, 7
        %v694 = vrot.slane %v673, 7
        %v695 = vrot.slane %v675, 7
        %v696 = vrot.slane %v677, 7
        %v697 = vrot.slane %v679, 7
        %v698 = vrot.slane %v681, 7
        %v699 = vrot.slane %v683, 7
        %vm716 = vcmask 1040384
        %v717 = vrot.slane %v668, 7
        %v718 = vsel %vm716, %v717, %v692
        %v719 = vrot.slane %v670, 7
        %v720 = vsel %vm716, %v719, %v693
        %v721 = vrot.slane %v672, 7
        %v722 = vsel %vm716, %v721, %v694
        %v723 = vrot.slane %v674, 7
        %v724 = vsel %vm716, %v723, %v695
        %v725 = vrot.slane %v676, 7
        %v726 = vsel %vm716, %v725, %v696
        %v727 = vrot.slane %v678, 7
        %v728 = vsel %vm716, %v727, %v697
        %v729 = vrot.slane %v680, 7
        %v730 = vsel %vm716, %v729, %v698
        %v731 = vrot.slane %v682, 7
        %v732 = vsel %vm716, %v731, %v699
        %v749 = vsel %vm716, %v692, %v717
        %v750 = vsel %vm716, %v693, %v719
        %v751 = vsel %vm716, %v694, %v721
        %v752 = vsel %vm716, %v695, %v723
        %v753 = vsel %vm716, %v696, %v725
        %v754 = vsel %vm716, %v697, %v727
        %v755 = vsel %vm716, %v698, %v729
        %v756 = vsel %vm716, %v699, %v731
        %vm765 = vcmask 1046528
        %v766 = vrot.slane %v749, 1
        %v767 = vrot.slane %v718, 1
        %v768 = vsel %vm765, %v766, %v767
        %v769 = vsel %vm765, %v767, %v766
        %v770 = vrot.slane %v750, 1
        %v771 = vrot.slane %v720, 1
        %v772 = vsel %vm765, %v770, %v771
        %v773 = vsel %vm765, %v771, %v770
        %v774 = vrot.slane %v751, 1
        %v775 = vrot.slane %v722, 1
        %v776 = vsel %vm765, %v774, %v775
        %v777 = vsel %vm765, %v775, %v774
        %v778 = vrot.slane %v752, 1
        %v779 = vrot.slane %v724, 1
        %v780 = vsel %vm765, %v778, %v779
        %v781 = vsel %vm765, %v779, %v778
        %v782 = vrot.slane %v753, 1
        %v783 = vrot.slane %v726, 1
        %v784 = vsel %vm765, %v782, %v783
        %v785 = vsel %vm765, %v783, %v782
        %v786 = vrot.slane %v754, 1
        %v787 = vrot.slane %v728, 1
        %v788 = vsel %vm765, %v786, %v787
        %v789 = vsel %vm765, %v787, %v786
        %v790 = vrot.slane %v755, 1
        %v791 = vrot.slane %v730, 1
        %v792 = vsel %vm765, %v790, %v791
        %v793 = vsel %vm765, %v791, %v790
        %v794 = vrot.slane %v756, 1
        %v795 = vrot.slane %v732, 1
        %v796 = vsel %vm765, %v794, %v795
        %v797 = vsel %vm765, %v795, %v794
        %vm814 = vcmask 1045504
        %v815 = vrot.slane %v749, 2
        %v816 = vrot.slane %v718, 2
        %v817 = vsel %vm814, %v815, %v816
        %v818 = vsel %vm814, %v816, %v815
        %v819 = vrot.slane %v750, 2
        %v820 = vrot.slane %v720, 2
        %v821 = vsel %vm814, %v819, %v820
        %v822 = vsel %vm814, %v820, %v819
        %v823 = vrot.slane %v751, 2
        %v824 = vrot.slane %v722, 2
        %v825 = vsel %vm814, %v823, %v824
        %v826 = vsel %vm814, %v824, %v823
        %v827 = vrot.slane %v752, 2
        %v828 = vrot.slane %v724, 2
        %v829 = vsel %vm814, %v827, %v828
        %v830 = vsel %vm814, %v828, %v827
        %v831 = vrot.slane %v753, 2
        %v832 = vrot.slane %v726, 2
        %v833 = vsel %vm814, %v831, %v832
        %v834 = vsel %vm814, %v832, %v831
        %v835 = vrot.slane %v754, 2
        %v836 = vrot.slane %v728, 2
        %v837 = vsel %vm814, %v835, %v836
        %v838 = vsel %vm814, %v836, %v835
        %v839 = vrot.slane %v755, 2
        %v840 = vrot.slane %v730, 2
        %v841 = vsel %vm814, %v839, %v840
        %v842 = vsel %vm814, %v840, %v839
        %v843 = vrot.slane %v756, 2
        %v844 = vrot.slane %v732, 2
        %v845 = vsel %vm814, %v843, %v844
        %v846 = vsel %vm814, %v844, %v843
        %v863 = vpack.c.bf16 %v718, %v749
        %v864 = vpack.c.bf16 %v769, %v768
        %v865 = vpack.c.bf16 %v818, %v817
        %v866 = vpack.c.bf16 %v720, %v750
        %v867 = vpack.c.bf16 %v773, %v772
        %v868 = vpack.c.bf16 %v822, %v821
        %v869 = vpack.c.bf16 %v722, %v751
        %v870 = vpack.c.bf16 %v777, %v776
        %v871 = vpack.c.bf16 %v826, %v825
        %v872 = vpack.c.bf16 %v724, %v752
        %v873 = vpack.c.bf16 %v781, %v780
        %v874 = vpack.c.bf16 %v830, %v829
        %v875 = vpack.c.bf16 %v726, %v753
        %v876 = vpack.c.bf16 %v785, %v784
        %v877 = vpack.c.bf16 %v834, %v833
        %v878 = vpack.c.bf16 %v728, %v754
        %v879 = vpack.c.bf16 %v789, %v788
        %v880 = vpack.c.bf16 %v838, %v837
        %v881 = vpack.c.bf16 %v730, %v755
        %v882 = vpack.c.bf16 %v793, %v792
        %v883 = vpack.c.bf16 %v842, %v841
        %v884 = vpack.c.bf16 %v732, %v756
        %v885 = vpack.c.bf16 %v797, %v796
        %v886 = vpack.c.bf16 %v846, %v845
        %v935 = vunpack.c.l.b16 %v215
        %v936 = vunpack.c.l.b16 %v216
        %v937 = vunpack.c.l.b16 %v217
        %v938 = vunpack.c.l.b16 %v218
        %v939 = vunpack.c.l.b16 %v219
        %v940 = vunpack.c.l.b16 %v220
        %v941 = vunpack.c.l.b16 %v221
        %v942 = vunpack.c.l.b16 %v222
        %v943 = vunpack.c.l.b16 %v223
        %v944 = vunpack.c.l.b16 %v224
        %v945 = vunpack.c.l.b16 %v225
        %v946 = vunpack.c.l.b16 %v226
        %v947 = vunpack.c.l.b16 %v227
        %v948 = vunpack.c.l.b16 %v228
        %v949 = vunpack.c.l.b16 %v229
        %v950 = vunpack.c.l.b16 %v230
        %v951 = vunpack.c.l.b16 %v231
        %v952 = vunpack.c.l.b16 %v232
        %v953 = vunpack.c.l.b16 %v233
        %v954 = vunpack.c.l.b16 %v234
        %v955 = vunpack.c.l.b16 %v235
        %v956 = vunpack.c.l.b16 %v236
        %v957 = vunpack.c.l.b16 %v237
        %v958 = vunpack.c.l.b16 %v238
        %v959 = vunpack.c.l.b16 %v239
        %v960 = vunpack.c.l.b16 %v240
        %v961 = vunpack.c.l.b16 %v241
        %v962 = vunpack.c.l.b16 %v242
        %v963 = vunpack.c.l.b16 %v243
        %v964 = vunpack.c.l.b16 %v244
        %v965 = vunpack.c.l.b16 %v245
        %v966 = vunpack.c.l.b16 %v246
        %v967 = vunpack.c.l.b16 %v247
        %v968 = vunpack.c.l.b16 %v248
        %v969 = vunpack.c.l.b16 %v249
        %v970 = vunpack.c.l.b16 %v250
        %v971 = vunpack.c.l.b16 %v251
        %v972 = vunpack.c.l.b16 %v252
        %v973 = vunpack.c.l.b16 %v253
        %v974 = vunpack.c.l.b16 %v254
        %v975 = vunpack.c.l.b16 %v255
        %v976 = vunpack.c.l.b16 %v256
        %v977 = vunpack.c.l.b16 %v257
        %v978 = vunpack.c.l.b16 %v258
        %v979 = vunpack.c.l.b16 %v259
        %v980 = vunpack.c.l.b16 %v260
        %v981 = vunpack.c.l.b16 %v261
        %v982 = vunpack.c.l.b16 %v262
        %v983 = vpack.c.b16 %v936, %v935
        %v984 = vpack.c.b16 %v938, %v937
        %v985 = vpack.c.b16 %v940, %v939
        %v986 = vpack.c.b16 %v942, %v941
        %v987 = vpack.c.b16 %v944, %v943
        %v988 = vpack.c.b16 %v946, %v945
        %v989 = vpack.c.b16 %v948, %v947
        %v990 = vpack.c.b16 %v950, %v949
        %v991 = vpack.c.b16 %v952, %v951
        %v992 = vpack.c.b16 %v954, %v953
        %v993 = vpack.c.b16 %v956, %v955
        %v994 = vpack.c.b16 %v958, %v957
        %v995 = vpack.c.b16 %v960, %v959
        %v996 = vpack.c.b16 %v962, %v961
        %v997 = vpack.c.b16 %v964, %v963
        %v998 = vpack.c.b16 %v966, %v965
        %v999 = vpack.c.b16 %v968, %v967
        %v1000 = vpack.c.b16 %v970, %v969
        %v1001 = vpack.c.b16 %v972, %v971
        %v1002 = vpack.c.b16 %v974, %v973
        %v1003 = vpack.c.b16 %v976, %v975
        %v1004 = vpack.c.b16 %v978, %v977
        %v1005 = vpack.c.b16 %v980, %v979
        %v1006 = vpack.c.b16 %v982, %v981
        %1031 = vmatprep.subr.bf16.mxu0 0
        %1032 = vmatpush1.bf16.msra.mxu0 %v983
        %1033 = vmatprep.subr.bf16.mxu0 0
        %1034 = vmatpush1.bf16.msra.mxu0 %v984
        %1035 = vmatprep.subr.bf16.mxu0 0
        %1036 = vmatpush1.bf16.msra.mxu0 %v985
        %1037 = vmatprep.subr.bf16.mxu0 0
        %1038 = vmatpush1.bf16.msra.mxu0 %v986
        %1039 = vmatprep.subr.bf16.mxu0 0
        %1040 = vmatpush1.bf16.msra.mxu0 %v987
        %1041 = vmatprep.subr.bf16.mxu0 0
        %1042 = vmatpush1.bf16.msra.mxu0 %v988
        %1043 = vmatprep.subr.bf16.mxu0 0
        %1044 = vmatpush1.bf16.msra.mxu0 %v989
        %1045 = vmatprep.subr.bf16.mxu0 0
        %1046 = vmatpush1.bf16.msra.mxu0 %v990
        %1047 = vmatprep.subr.bf16.mxu0 0
        %1048 = vmatpush1.bf16.msra.mxu0 %v991
        %1049 = vmatprep.subr.bf16.mxu0 0
        %1050 = vmatpush1.bf16.msra.mxu0 %v992
        %1051 = vmatprep.subr.bf16.mxu0 0
        %1052 = vmatpush1.bf16.msra.mxu0 %v993
        %1053 = vmatprep.subr.bf16.mxu0 0
        %1054 = vmatpush1.bf16.msra.mxu0 %v994
        %1055 = vmatprep.subr.bf16.mxu0 0
        %1056 = vmatpush1.bf16.msra.mxu0 %v995
        %1057 = vmatprep.subr.bf16.mxu0 0
        %1058 = vmatpush1.bf16.msra.mxu0 %v996
        %1059 = vmatprep.subr.bf16.mxu0 0
        %1060 = vmatpush1.bf16.msra.mxu0 %v997
        %1061 = vmatprep.subr.bf16.mxu0 0
        %1062 = vmatpush1.bf16.msra.mxu0 %v998
        %1063 = vmatprep.mubr.bf16.mxu0 %v864
        %1064 = vmatmul.mubr.bf16.gmra.mrb[0].mxu0 %v863
        %v1065 = vpop.f32.mrb[0].mxu0
        %v1066 = vadd.f32 0.0, %v1065
        %v1067 = vpop.f32.mrb[0].mxu0
        %v1068 = vpop.f32.mrb[0].mxu0
        %v1069 = vadd.f32 0.0, %v1068
        %v1070 = vpop.f32.mrb[0].mxu0
        %1071 = vmatprep.mubr.bf16.mxu0 %v867
        %1072 = vmatmul.mubr.bf16.gmra.mrb[0].mxu0 %v866
        %v1073 = vpop.f32.mrb[0].mxu0
        %v1074 = vadd.f32 0.0, %v1073
        %v1075 = vpop.f32.mrb[0].mxu0
        %v1076 = vpop.f32.mrb[0].mxu0
        %v1077 = vadd.f32 0.0, %v1076
        %v1078 = vpop.f32.mrb[0].mxu0
        %1079 = vmatprep.mubr.bf16.mxu0 %v870
        %1080 = vmatmul.mubr.bf16.gmra.mrb[0].mxu0 %v869
        %v1081 = vpop.f32.mrb[0].mxu0
        %v1082 = vadd.f32 0.0, %v1081
        %v1083 = vpop.f32.mrb[0].mxu0
        %v1084 = vpop.f32.mrb[0].mxu0
        %v1085 = vadd.f32 0.0, %v1084
        %v1086 = vpop.f32.mrb[0].mxu0
        %1087 = vmatprep.mubr.bf16.mxu0 %v873
        %1088 = vmatmul.mubr.bf16.gmra.mrb[0].mxu0 %v872
        %v1089 = vpop.f32.mrb[0].mxu0
        %v1090 = vadd.f32 0.0, %v1089
        %v1091 = vpop.f32.mrb[0].mxu0
        %v1092 = vpop.f32.mrb[0].mxu0
        %v1093 = vadd.f32 0.0, %v1092
        %v1094 = vpop.f32.mrb[0].mxu0
        %1095 = vmatprep.mubr.bf16.mxu0 %v876
        %1096 = vmatmul.mubr.bf16.gmra.mrb[0].mxu0 %v875
        %v1097 = vpop.f32.mrb[0].mxu0
        %v1098 = vadd.f32 0.0, %v1097
        %v1099 = vpop.f32.mrb[0].mxu0
        %v1100 = vpop.f32.mrb[0].mxu0
        %v1101 = vadd.f32 0.0, %v1100
        %v1102 = vpop.f32.mrb[0].mxu0
        %1103 = vmatprep.mubr.bf16.mxu0 %v879
        %1104 = vmatmul.mubr.bf16.gmra.mrb[0].mxu0 %v878
        %v1105 = vpop.f32.mrb[0].mxu0
        %v1106 = vadd.f32 0.0, %v1105
        %v1107 = vpop.f32.mrb[0].mxu0
        %v1108 = vpop.f32.mrb[0].mxu0
        %v1109 = vadd.f32 0.0, %v1108
        %v1110 = vpop.f32.mrb[0].mxu0
        %1111 = vmatprep.mubr.bf16.mxu0 %v882
        %1112 = vmatmul.mubr.bf16.gmra.mrb[0].mxu0 %v881
        %v1113 = vpop.f32.mrb[0].mxu0
        %v1114 = vadd.f32 0.0, %v1113
        %v1115 = vpop.f32.mrb[0].mxu0
        %v1116 = vpop.f32.mrb[0].mxu0
        %v1117 = vadd.f32 0.0, %v1116
        %v1118 = vpop.f32.mrb[0].mxu0
        %1119 = vmatprep.mubr.bf16.mxu0 %v885
        %1120 = vmatmul.mubr.bf16.gmra.mrb[0].mxu0 %v884
        %v1121 = vpop.f32.mrb[0].mxu0
        %v1122 = vadd.f32 0.0, %v1121
        %v1123 = vpop.f32.mrb[0].mxu0
        %v1124 = vpop.f32.mrb[0].mxu0
        %v1125 = vadd.f32 0.0, %v1124
        %v1126 = vpop.f32.mrb[0].mxu0
        %1127 = vdwg.mxu0
        %1128 = vmatprep.subr.bf16.mxu0 0
        %1129 = vmatpush1.bf16.msra.mxu0 %v999
        %1130 = vmatprep.subr.bf16.mxu0 0
        %1131 = vmatpush1.bf16.msra.mxu0 %v1000
        %1132 = vmatprep.subr.bf16.mxu0 0
        %1133 = vmatpush1.bf16.msra.mxu0 %v1001
        %1134 = vmatprep.subr.bf16.mxu0 0
        %1135 = vmatpush1.bf16.msra.mxu0 %v1002
        %1136 = vmatprep.subr.bf16.mxu0 0
        %1137 = vmatpush1.bf16.msra.mxu0 %v1003
        %1138 = vmatprep.subr.bf16.mxu0 0
        %1139 = vmatpush1.bf16.msra.mxu0 %v1004
        %1140 = vmatprep.subr.bf16.mxu0 0
        %1141 = vmatpush1.bf16.msra.mxu0 %v1005
        %1142 = vmatprep.subr.bf16.mxu0 0
        %1143 = vmatpush1.bf16.msra.mxu0 %v1006
        %1144 = vmatprep.subr.bf16.mxu0 0
        %1145 = vmatpush1.bf16.msra.mxu0 0
        %1146 = vmatprep.subr.bf16.mxu0 0
        %1147 = vmatpush1.bf16.msra.mxu0 0
        %1148 = vmatprep.subr.bf16.mxu0 0
        %1149 = vmatpush1.bf16.msra.mxu0 0
        %1150 = vmatprep.subr.bf16.mxu0 0
        %1151 = vmatpush1.bf16.msra.mxu0 0
        %1152 = vmatprep.subr.bf16.mxu0 0
        %1153 = vmatpush1.bf16.msra.mxu0 0
        %1154 = vmatprep.subr.bf16.mxu0 0
        %1155 = vmatpush1.bf16.msra.mxu0 0
        %1156 = vmatprep.subr.bf16.mxu0 0
        %1157 = vmatpush1.bf16.msra.mxu0 0
        %1158 = vmatprep.subr.bf16.mxu0 0
        %1159 = vmatpush1.bf16.msra.mxu0 0
        %1160 = vmatprep.mubr.bf16.mxu0 0
        %1161 = vmatmul.mubr.bf16.gmra.mrb[0].mxu0 %v865
        %v1162 = vpop.f32.mrb[0].mxu0
        %v1163 = vadd.f32 %v1066, %v1162
        %v1164 = vpop.f32.mrb[0].mxu0
        %v1165 = vpop.f32.mrb[0].mxu0
        %v1166 = vadd.f32 %v1069, %v1165
        %v1167 = vpop.f32.mrb[0].mxu0
        %1168 = vmatprep.mubr.bf16.mxu0 0
        %1169 = vmatmul.mubr.bf16.gmra.mrb[0].mxu0 %v868
        %v1170 = vpop.f32.mrb[0].mxu0
        %v1171 = vadd.f32 %v1074, %v1170
        %v1172 = vpop.f32.mrb[0].mxu0
        %v1173 = vpop.f32.mrb[0].mxu0
        %v1174 = vadd.f32 %v1077, %v1173
        %v1175 = vpop.f32.mrb[0].mxu0
        %1176 = vmatprep.mubr.bf16.mxu0 0
        %1177 = vmatmul.mubr.bf16.gmra.mrb[0].mxu0 %v871
        %v1178 = vpop.f32.mrb[0].mxu0
        %v1179 = vadd.f32 %v1082, %v1178
        %v1180 = vpop.f32.mrb[0].mxu0
        %v1181 = vpop.f32.mrb[0].mxu0
        %v1182 = vadd.f32 %v1085, %v1181
        %v1183 = vpop.f32.mrb[0].mxu0
        %1184 = vmatprep.mubr.bf16.mxu0 0
        %1185 = vmatmul.mubr.bf16.gmra.mrb[0].mxu0 %v874
        %v1186 = vpop.f32.mrb[0].mxu0
        %v1187 = vadd.f32 %v1090, %v1186
        %v1188 = vpop.f32.mrb[0].mxu0
        %v1189 = vpop.f32.mrb[0].mxu0
        %v1190 = vadd.f32 %v1093, %v1189
        %v1191 = vpop.f32.mrb[0].mxu0
        %1192 = vmatprep.mubr.bf16.mxu0 0
        %1193 = vmatmul.mubr.bf16.gmra.mrb[0].mxu0 %v877
        %v1194 = vpop.f32.mrb[0].mxu0
        %v1195 = vadd.f32 %v1098, %v1194
        %v1196 = vpop.f32.mrb[0].mxu0
        %v1197 = vpop.f32.mrb[0].mxu0
        %v1198 = vadd.f32 %v1101, %v1197
        %v1199 = vpop.f32.mrb[0].mxu0
        %1200 = vmatprep.mubr.bf16.mxu0 0
        %1201 = vmatmul.mubr.bf16.gmra.mrb[0].mxu0 %v880
        %v1202 = vpop.f32.mrb[0].mxu0
        %v1203 = vadd.f32 %v1106, %v1202
        %v1204 = vpop.f32.mrb[0].mxu0
        %v1205 = vpop.f32.mrb[0].mxu0
        %v1206 = vadd.f32 %v1109, %v1205
        %v1207 = vpop.f32.mrb[0].mxu0
        %1208 = vmatprep.mubr.bf16.mxu0 0
        %1209 = vmatmul.mubr.bf16.gmra.mrb[0].mxu0 %v883
        %v1210 = vpop.f32.mrb[0].mxu0
        %v1211 = vadd.f32 %v1114, %v1210
        %v1212 = vpop.f32.mrb[0].mxu0
        %v1213 = vpop.f32.mrb[0].mxu0
        %v1214 = vadd.f32 %v1117, %v1213
        %v1215 = vpop.f32.mrb[0].mxu0
        %1216 = vmatprep.mubr.bf16.mxu0 0
        %1217 = vmatmul.mubr.bf16.gmra.mrb[0].mxu0 %v886
        %v1218 = vpop.f32.mrb[0].mxu0
        %v1219 = vadd.f32 %v1122, %v1218
        %v1220 = vpop.f32.mrb[0].mxu0
        %v1221 = vpop.f32.mrb[0].mxu0
        %v1222 = vadd.f32 %v1125, %v1221
        %v1223 = vpop.f32.mrb[0].mxu0
        %1224 = vdwg.mxu0
        %v1225 = vmax.f32 %v1163, %v1166
        %v1226 = vrot.slane %v1225, 4
        %v1227 = vmax.f32 %v1225, %v1226
        %v1228 = vrot.slane %v1227, 2
        %v1229 = vmax.f32 %v1227, %v1228
        %v1230 = vrot.slane %v1229, 1
        %v1231 = vmax.f32 %v1229, %v1230
        %v1232 = vmax.f32 %v1171, %v1174
        %v1233 = vrot.slane %v1232, 4
        %v1234 = vmax.f32 %v1232, %v1233
        %v1235 = vrot.slane %v1234, 2
        %v1236 = vmax.f32 %v1234, %v1235
        %v1237 = vrot.slane %v1236, 1
        %v1238 = vmax.f32 %v1236, %v1237
        %v1239 = vmax.f32 %v1179, %v1182
        %v1240 = vrot.slane %v1239, 4
        %v1241 = vmax.f32 %v1239, %v1240
        %v1242 = vrot.slane %v1241, 2
        %v1243 = vmax.f32 %v1241, %v1242
        %v1244 = vrot.slane %v1243, 1
        %v1245 = vmax.f32 %v1243, %v1244
        %v1246 = vmax.f32 %v1187, %v1190
        %v1247 = vrot.slane %v1246, 4
        %v1248 = vmax.f32 %v1246, %v1247
        %v1249 = vrot.slane %v1248, 2
        %v1250 = vmax.f32 %v1248, %v1249
        %v1251 = vrot.slane %v1250, 1
        %v1252 = vmax.f32 %v1250, %v1251
        %v1253 = vmax.f32 %v1195, %v1198
        %v1254 = vrot.slane %v1253, 4
        %v1255 = vmax.f32 %v1253, %v1254
        %v1256 = vrot.slane %v1255, 2
        %v1257 = vmax.f32 %v1255, %v1256
        %v1258 = vrot.slane %v1257, 1
        %v1259 = vmax.f32 %v1257, %v1258
        %v1260 = vmax.f32 %v1203, %v1206
        %v1261 = vrot.slane %v1260, 4
        %v1262 = vmax.f32 %v1260, %v1261
        %v1263 = vrot.slane %v1262, 2
        %v1264 = vmax.f32 %v1262, %v1263
        %v1265 = vrot.slane %v1264, 1
        %v1266 = vmax.f32 %v1264, %v1265
        %v1267 = vmax.f32 %v1211, %v1214
        %v1268 = vrot.slane %v1267, 4
        %v1269 = vmax.f32 %v1267, %v1268
        %v1270 = vrot.slane %v1269, 2
        %v1271 = vmax.f32 %v1269, %v1270
        %v1272 = vrot.slane %v1271, 1
        %v1273 = vmax.f32 %v1271, %v1272
        %v1274 = vmax.f32 %v1219, %v1222
        %v1275 = vrot.slane %v1274, 4
        %v1276 = vmax.f32 %v1274, %v1275
        %v1277 = vrot.slane %v1276, 2
        %v1278 = vmax.f32 %v1276, %v1277
        %v1279 = vrot.slane %v1278, 1
        %v1280 = vmax.f32 %v1278, %v1279
        %vm1289 = vcmask 1041409
        %v1290 = vsel %vm1289, %v1238, %v1231
        %vm1291 = vcmask 1042434
        %v1292 = vsel %vm1291, %v1245, %v1290
        %vm1293 = vcmask 1043459
        %v1294 = vsel %vm1293, %v1252, %v1292
        %vm1295 = vcmask 1044484
        %v1296 = vsel %vm1295, %v1259, %v1294
        %vm1297 = vcmask 1045509
        %v1298 = vsel %vm1297, %v1266, %v1296
        %vm1299 = vcmask 1046534
        %v1300 = vsel %vm1299, %v1273, %v1298
        %vm1301 = vcmask 1047559
        %v1302 = vsel %vm1301, %v1280, %v1300
        %1304 = vst [vmem:[%s212] sm:$0xff] %v1302
        %s1305 = sand.u32 %s97, 1
        %s1306 = scalar_lea.sflag [#allocation4], %s1305
        %s1307 = sand.u32 %s97, 1
        %s1308 = smul.addr %s1307, 8
        %s1309 = scalar_lea.vmem [#allocation8], %s1308
        // Predicated region
        $region45: #{tpu_custom_call.1} parent=31 // pred_check
          %p1310 = pneg %p107
        $region46: #{tpu_custom_call.1} parent=31 // pred_check_branch
          %1312 = sbr.rel (%p1310) target = $region48
        $region47: #{tpu_custom_call.1} parent=31 // pred_region
          %s1314 = ssub.s32 128, 128
          %1315 = vsyncadd %s1306, %s1314
          %s1316 = smul.addr %s21, 128
          %s1317 = scalar_lea.hbm %s3, %s1316
          %s1319 = sshll.u32 %s1309, 4
          %s1320 = int_to_ptr.vmem [resolvable:$true] %s1319
          %1322 = dma.vmem_to_hbm [thread:$0]  %s1320, 128, %s1317, %s1306
        $region48: #{tpu_custom_call.1} parent=31 // pred_fallthru
          _
      $region32: #{tpu_custom_call.1} parent=5 // pred_fallthru
        _
      %p1323 = scmp.le.s32.totalorder 2, %s16
      // Predicated region
      $region49: #{tpu_custom_call.1} parent=5 // pred_check
        %p1324 = pneg %p1323
      $region50: #{tpu_custom_call.1} parent=5 // pred_check_branch
        %1326 = sbr.rel (%p1324) target = $region52
      $region51: #{tpu_custom_call.1} parent=5 // pred_region
        %s1327 = ssub.s32 %s16, 2
        // Predicated region
        $region53: #{tpu_custom_call.1} parent=51 // pred_check
          %p1328 = pneg %p113
        $region54: #{tpu_custom_call.1} parent=51 // pred_check_branch
          %1330 = sbr.rel (%p1328) target = $region56
        $region55: #{tpu_custom_call.1} parent=51 // pred_region
          %s1331 = sand.u32 %s98, 1
          %s1332 = scalar_lea.sflag [#allocation4], %s1331
          %s1333 = sand.u32 %s98, 1
          %s1334 = smul.addr %s1333, 8
          %s1335 = scalar_lea.vmem [#allocation8], %s1334
          %1336 = dma.done %s1332, 128
        $region56: #{tpu_custom_call.1} parent=51 // pred_fallthru
          _
      $region52: #{tpu_custom_call.1} parent=5 // pred_fallthru
        _
    $region6: #{tpu_custom_call.1} parent=1 // loop_footer
      %s20 = sadd.s32 1, %s16
    $region7: #{tpu_custom_call.1} parent=1 // loop_footer_branch
      %15 = sbr.rel target = $region3
    $region8: #{tpu_custom_call.1} parent=1 // loop_exit
      _
    %1337 = vsyncpa [#allocation3], 1
    %s1338 = scalar_lea.sflag [#allocation3], 1
    %1339 = vsyncpa %s1338, 1
    %1340 = vsyncpa [#allocation6], 1
    %1341 = vsyncpa [#allocation4], 1
    %s1342 = scalar_lea.sflag [#allocation4], 1
    %1343 = vsyncpa %s1342, 1

</llo_original>
